<compile_context>
chip_gen: v7x
topology: tpu7x:2x2x1
jax: 0.10.0
libtpu: 0.0.40
codegen_flags: <defaults>
</compile_context>

<pallas_src>
import functools

import jax
import jax.numpy as jnp
from jax.experimental import pallas as pl
from jax.experimental.pallas import tpu as pltpu


# ----------------------------------------------------------------------------
# Kernel 1: refined_kernel = weight + depthwise_conv2d(weight, convmap)
# Channels (C2d = C_out*C_in) sit on the 128-lane axis; spatial taps on
# sublanes.  The per-channel coefficient multiply is a plain lane-wise VPU op.
# ----------------------------------------------------------------------------
def _refine_kernel(wpad_ref, kmap_ref, w_ref, out_ref, *, K, map_k):
    # wpad_ref : (K+2p, K+2p, C2d)  zero-padded basis kernels (channels-last)
    # kmap_ref : (map_k*map_k, C2d) per-channel (depthwise) map coefficients
    # w_ref    : (K, K, C2d)        original basis kernels (residual term)
    # out_ref  : (K, K, C2d)
    acc = w_ref[...].astype(jnp.float32)
    for di in range(map_k):
        for dj in range(map_k):
            idx = di * map_k + dj
            coeff = kmap_ref[idx:idx + 1, :]             # (1, C2d)
            patch = wpad_ref[di:di + K, dj:dj + K, :]    # (K, K, C2d)
            acc = acc + patch.astype(jnp.float32) * coeff[None]
    out_ref[...] = acc.astype(out_ref.dtype)


def refine_weight(w, kmap, *, map_k):
    """weight + convmap(weight.view(1, C2d, K, K)).view(...), channels-last."""
    C_out, C_in, K, _ = w.shape
    C2d = C_out * C_in
    pm = map_k // 2
    # (C_out, C_in, K, K) -> (K, K, C2d) with c2d = o*C_in + i.
    w_t = jnp.transpose(w.reshape(C2d, K, K), (1, 2, 0))
    w_pad_t = jnp.pad(w_t, ((pm, pm), (pm, pm), (0, 0)))
    kmap_t = jnp.transpose(kmap.reshape(C2d, map_k * map_k), (1, 0))
    refined_t = pl.pallas_call(
        functools.partial(_refine_kernel, K=K, map_k=map_k),
        out_shape=jax.ShapeDtypeStruct((K, K, C2d), jnp.float32),
    )(w_pad_t, kmap_t, w_t)
    return refined_t                                      # (K, K, C2d)


# ----------------------------------------------------------------------------
# Kernel 2: direct conv2d (groups=1) as im2col + one fat MXU matmul per tile.
# ----------------------------------------------------------------------------
def _conv_kernel(x_ref, w_ref, o_ref, patches_ref, *,
                 K, stride, TH, W_out, C_in):
    # x_ref       : (H_pad, W_pad, C_in)      full padded image (one batch elt)
    # w_ref       : (K*K*C_in, C_out)         refined weight, resident
    # o_ref       : (TH*W_out, C_out)         output tile (TH output rows)
    # patches_ref : VMEM (TH, W_out, K*K*C_in) im2col staging buffer
    h = pl.program_id(1)
    h0 = pl.multiple_of(h * TH * stride, TH * stride)
    for kh in range(K):
        for kw in range(K):
            if stride == 1:
                patch = x_ref[pl.ds(h0 + kh, TH), kw:kw + W_out, :]
            else:
                patch = x_ref[pl.ds(h0 + kh, TH, stride),
                              pl.ds(kw, W_out, stride), :]
            c0 = (kh * K + kw) * C_in
            patches_ref[:, :, c0:c0 + C_in] = patch
    p = patches_ref[...].reshape(TH * W_out, K * K * C_in)
    acc = jnp.dot(p, w_ref[...], preferred_element_type=jnp.float32)
    o_ref[...] = acc.astype(o_ref.dtype)


def _pick_block_h(H_out, W_out, target_rows=512):
    """Largest H_out divisor whose tile keeps the output block 8-row aligned."""
    cands = [th for th in range(1, H_out + 1)
             if H_out % th == 0 and ((th * W_out) % 8 == 0 or th == H_out)]
    fit = [th for th in cands if th * W_out <= target_rows]
    return max(fit) if fit else min(cands)


def refconv_forward(x, w, kmap, *, stride=1, padding=None, groups=1,
                    map_k=3, block_h=None):
    """RefConv.forward: x NCHW, w OIHW (basis kernel), kmap convmap weight."""
    # TODO(synk): grouped conv (groups > 1) path not implemented; groups=1 only.
    assert groups == 1
    C_out, C_in, K, _ = w.shape
    if padding is None:
        padding = K // 2

    refined_t = refine_weight(w, kmap, map_k=map_k)       # (K, K, C_out*C_in)
    # -> HWIO -> (K*K*C_in, C_out): contraction dim folds the K*K taps.
    w_hwio = jnp.transpose(refined_t.reshape(K, K, C_out, C_in), (0, 1, 3, 2))
    w_flat = w_hwio.reshape(K * K * C_in, C_out)
    # NOTE: keep f32 weights/activations so results match the f32 reference;
    # cast both to bf16 here for 2x MXU throughput if the accuracy budget allows.

    N, _, H, W = x.shape
    H_out = (H + 2 * padding - K) // stride + 1
    W_out = (W + 2 * padding - K) // stride + 1
    H_pad, W_pad = H + 2 * padding, W + 2 * padding

    if block_h is None:
        block_h = _pick_block_h(H_out, W_out)
    assert H_out % block_h == 0
    n_h = H_out // block_h

    x_nhwc = jnp.transpose(x, (0, 2, 3, 1))
    x_pad = jnp.pad(x_nhwc, ((0, 0), (padding, padding),
                             (padding, padding), (0, 0)))

    itemsize = jnp.dtype(x.dtype).itemsize
    cost = pl.CostEstimate(
        flops=2 * N * H_out * W_out * K * K * C_in * C_out,
        transcendentals=0,
        bytes_accessed=(x_pad.size * itemsize + w_flat.size * 4
                        + N * H_out * W_out * C_out * itemsize))

    out_flat = pl.pallas_call(
        functools.partial(_conv_kernel, K=K, stride=stride,
                          TH=block_h, W_out=W_out, C_in=C_in),
        out_shape=jax.ShapeDtypeStruct((N, H_out * W_out, C_out), x.dtype),
        grid=(N, n_h),
        in_specs=[
            # Full padded image per batch element; index map constant in h so
            # the block stays resident across the inner (h) axis (no re-DMA).
            pl.BlockSpec((None, H_pad, W_pad, C_in), lambda n, h: (n, 0, 0, 0)),
            # Weight block constant on every grid axis -> resident, one DMA.
            pl.BlockSpec((K * K * C_in, C_out), lambda n, h: (0, 0)),
        ],
        out_specs=pl.BlockSpec((None, block_h * W_out, C_out),
                               lambda n, h: (n, h, 0)),
        scratch_shapes=[pltpu.VMEM((block_h, W_out, K * K * C_in), x.dtype)],
        compiler_params=pltpu.CompilerParams(
            dimension_semantics=("parallel", "parallel")),
        cost_estimate=cost,
    )(x_pad, w_flat)

    out_nhwc = out_flat.reshape(N, H_out, W_out, C_out)
    return jnp.transpose(out_nhwc, (0, 3, 1, 2))          # back to NCHW


def ref_forward(x, w, kmap, *, stride, padding, map_k):
    """Pure-JAX reference (matches the PyTorch module's forward)."""
    C_out, C_in, K, _ = w.shape
    if padding is None:
        padding = K // 2
    C2d = C_out * C_in
    pm = map_k // 2
    origin = w.reshape(1, C2d, K, K)
    delta = jax.lax.conv_general_dilated(
        origin, kmap, window_strides=(1, 1), padding=[(pm, pm), (pm, pm)],
        feature_group_count=C2d,
        dimension_numbers=('NCHW', 'OIHW', 'NCHW'))
    kern = w + delta.reshape(C_out, C_in, K, K)
    return jax.lax.conv_general_dilated(
        x, kern, window_strides=(stride, stride),
        padding=[(padding, padding), (padding, padding)],
        dimension_numbers=('NCHW', 'OIHW', 'NCHW'))


if __name__ == "__main__":
    # Small shapes consistent with RefConv.__init__:
    N, C_in, C_out, H, W = 2, 4, 8, 16, 16
    K, map_k, stride, groups = 3, 3, 1, 1
    padding = None   # -> kernel_size // 2 = 1

    key = jax.random.PRNGKey(0)
    kx, kw_, km = jax.random.split(key, 3)
    x = jax.random.normal(kx, (N, C_in, H, W), jnp.float32)
    # The PyTorch module registers `weight` as a zeros buffer; use a
    # deterministic random init so the kernels do non-trivial work.
    w = 0.1 * jax.random.normal(kw_, (C_out, C_in // groups, K, K), jnp.float32)
    # convmap weight shape: (num_2d_kernels, in/G, map_k, map_k); groups=1 -> depthwise.
    kmap = 0.1 * jax.random.normal(
        km, (C_out * C_in // groups, groups, map_k, map_k), jnp.float32)

    ref = ref_forward(x, w, kmap, stride=stride, padding=padding, map_k=map_k)

    # Forced multi-tile grid over H_out (exercises h > 0 tile indexing).
    out = refconv_forward(x, w, kmap, stride=stride, padding=padding,
                          groups=groups, map_k=map_k, block_h=8)
    out = jax.block_until_ready(out)
    assert out.shape == ref.shape, (out.shape, ref.shape)
    assert jnp.allclose(out, ref, atol=1e-4, rtol=1e-4), \
        float(jnp.max(jnp.abs(out - ref)))

    # Auto tile choice (single H tile at this toy size).
    out2 = refconv_forward(x, w, kmap, stride=stride, padding=padding,
                           groups=groups, map_k=map_k)
    out2 = jax.block_until_ready(out2)
    assert jnp.allclose(out2, ref, atol=1e-4, rtol=1e-4), \
        float(jnp.max(jnp.abs(out2 - ref)))

    print("KERNEL_OK")
</pallas_src>

<mosaic_0001>
module attributes {stable_mosaic.version = 11 : i64} {
  func.func @_refine_kernel(%arg0: memref<5x5x32xf32, #tpu.memory_space<vmem>>, %arg1: memref<9x32xf32, #tpu.memory_space<vmem>>, %arg2: memref<3x3x32xf32, #tpu.memory_space<vmem>>, %arg3: memref<3x3x32xf32, #tpu.memory_space<vmem>>) attributes {dimension_semantics = [], scalar_prefetch = 0 : i64, scratch_operands = 0 : i64, tpu.core_type = #tpu.core_type<tc>} {
    %c0 = arith.constant 0 : index
    %c0_0 = arith.constant 0 : index
    %c0_1 = arith.constant 0 : index
    %0 = vector.load %arg2[%c0, %c0_0, %c0_1] : memref<3x3x32xf32, #tpu.memory_space<vmem>>, vector<3x3x32xf32>
    %c0_2 = arith.constant 0 : index
    %c0_3 = arith.constant 0 : index
    %1 = vector.load %arg1[%c0_2, %c0_3] : memref<9x32xf32, #tpu.memory_space<vmem>>, vector<1x32xf32>
    %c0_4 = arith.constant 0 : index
    %c0_5 = arith.constant 0 : index
    %c0_6 = arith.constant 0 : index
    %2 = vector.load %arg0[%c0_4, %c0_5, %c0_6] : memref<5x5x32xf32, #tpu.memory_space<vmem>>, vector<3x3x32xf32>
    %3 = vector.shape_cast %1 : vector<1x32xf32> to vector<1x1x32xf32>
    %4 = vector.broadcast %3 : vector<1x1x32xf32> to vector<3x3x32xf32>
    %5 = arith.mulf %2, %4 : vector<3x3x32xf32>
    %6 = arith.addf %0, %5 : vector<3x3x32xf32>
    %c1 = arith.constant 1 : index
    %c0_7 = arith.constant 0 : index
    %7 = vector.load %arg1[%c1, %c0_7] : memref<9x32xf32, #tpu.memory_space<vmem>>, vector<1x32xf32>
    %c0_8 = arith.constant 0 : index
    %c1_9 = arith.constant 1 : index
    %c0_10 = arith.constant 0 : index
    %8 = vector.load %arg0[%c0_8, %c1_9, %c0_10] : memref<5x5x32xf32, #tpu.memory_space<vmem>>, vector<3x3x32xf32>
    %9 = vector.shape_cast %7 : vector<1x32xf32> to vector<1x1x32xf32>
    %10 = vector.broadcast %9 : vector<1x1x32xf32> to vector<3x3x32xf32>
    %11 = arith.mulf %8, %10 : vector<3x3x32xf32>
    %12 = arith.addf %6, %11 : vector<3x3x32xf32>
    %c2 = arith.constant 2 : index
    %c0_11 = arith.constant 0 : index
    %13 = vector.load %arg1[%c2, %c0_11] : memref<9x32xf32, #tpu.memory_space<vmem>>, vector<1x32xf32>
    %c0_12 = arith.constant 0 : index
    %c2_13 = arith.constant 2 : index
    %c0_14 = arith.constant 0 : index
    %14 = vector.load %arg0[%c0_12, %c2_13, %c0_14] : memref<5x5x32xf32, #tpu.memory_space<vmem>>, vector<3x3x32xf32>
    %15 = vector.shape_cast %13 : vector<1x32xf32> to vector<1x1x32xf32>
    %16 = vector.broadcast %15 : vector<1x1x32xf32> to vector<3x3x32xf32>
    %17 = arith.mulf %14, %16 : vector<3x3x32xf32>
    %18 = arith.addf %12, %17 : vector<3x3x32xf32>
    %c3 = arith.constant 3 : index
    %c0_15 = arith.constant 0 : index
    %19 = vector.load %arg1[%c3, %c0_15] : memref<9x32xf32, #tpu.memory_space<vmem>>, vector<1x32xf32>
    %c1_16 = arith.constant 1 : index
    %c0_17 = arith.constant 0 : index
    %c0_18 = arith.constant 0 : index
    %20 = vector.load %arg0[%c1_16, %c0_17, %c0_18] : memref<5x5x32xf32, #tpu.memory_space<vmem>>, vector<3x3x32xf32>
    %21 = vector.shape_cast %19 : vector<1x32xf32> to vector<1x1x32xf32>
    %22 = vector.broadcast %21 : vector<1x1x32xf32> to vector<3x3x32xf32>
    %23 = arith.mulf %20, %22 : vector<3x3x32xf32>
    %24 = arith.addf %18, %23 : vector<3x3x32xf32>
    %c4 = arith.constant 4 : index
    %c0_19 = arith.constant 0 : index
    %25 = vector.load %arg1[%c4, %c0_19] : memref<9x32xf32, #tpu.memory_space<vmem>>, vector<1x32xf32>
    %c1_20 = arith.constant 1 : index
    %c1_21 = arith.constant 1 : index
    %c0_22 = arith.constant 0 : index
    %26 = vector.load %arg0[%c1_20, %c1_21, %c0_22] : memref<5x5x32xf32, #tpu.memory_space<vmem>>, vector<3x3x32xf32>
    %27 = vector.shape_cast %25 : vector<1x32xf32> to vector<1x1x32xf32>
    %28 = vector.broadcast %27 : vector<1x1x32xf32> to vector<3x3x32xf32>
    %29 = arith.mulf %26, %28 : vector<3x3x32xf32>
    %30 = arith.addf %24, %29 : vector<3x3x32xf32>
    %c5 = arith.constant 5 : index
    %c0_23 = arith.constant 0 : index
    %31 = vector.load %arg1[%c5, %c0_23] : memref<9x32xf32, #tpu.memory_space<vmem>>, vector<1x32xf32>
    %c1_24 = arith.constant 1 : index
    %c2_25 = arith.constant 2 : index
    %c0_26 = arith.constant 0 : index
    %32 = vector.load %arg0[%c1_24, %c2_25, %c0_26] : memref<5x5x32xf32, #tpu.memory_space<vmem>>, vector<3x3x32xf32>
    %33 = vector.shape_cast %31 : vector<1x32xf32> to vector<1x1x32xf32>
    %34 = vector.broadcast %33 : vector<1x1x32xf32> to vector<3x3x32xf32>
    %35 = arith.mulf %32, %34 : vector<3x3x32xf32>
    %36 = arith.addf %30, %35 : vector<3x3x32xf32>
    %c6 = arith.constant 6 : index
    %c0_27 = arith.constant 0 : index
    %37 = vector.load %arg1[%c6, %c0_27] : memref<9x32xf32, #tpu.memory_space<vmem>>, vector<1x32xf32>
    %c2_28 = arith.constant 2 : index
    %c0_29 = arith.constant 0 : index
    %c0_30 = arith.constant 0 : index
    %38 = vector.load %arg0[%c2_28, %c0_29, %c0_30] : memref<5x5x32xf32, #tpu.memory_space<vmem>>, vector<3x3x32xf32>
    %39 = vector.shape_cast %37 : vector<1x32xf32> to vector<1x1x32xf32>
    %40 = vector.broadcast %39 : vector<1x1x32xf32> to vector<3x3x32xf32>
    %41 = arith.mulf %38, %40 : vector<3x3x32xf32>
    %42 = arith.addf %36, %41 : vector<3x3x32xf32>
    %c7 = arith.constant 7 : index
    %c0_31 = arith.constant 0 : index
    %43 = vector.load %arg1[%c7, %c0_31] : memref<9x32xf32, #tpu.memory_space<vmem>>, vector<1x32xf32>
    %c2_32 = arith.constant 2 : index
    %c1_33 = arith.constant 1 : index
    %c0_34 = arith.constant 0 : index
    %44 = vector.load %arg0[%c2_32, %c1_33, %c0_34] : memref<5x5x32xf32, #tpu.memory_space<vmem>>, vector<3x3x32xf32>
    %45 = vector.shape_cast %43 : vector<1x32xf32> to vector<1x1x32xf32>
    %46 = vector.broadcast %45 : vector<1x1x32xf32> to vector<3x3x32xf32>
    %47 = arith.mulf %44, %46 : vector<3x3x32xf32>
    %48 = arith.addf %42, %47 : vector<3x3x32xf32>
    %c8 = arith.constant 8 : index
    %c0_35 = arith.constant 0 : index
    %49 = vector.load %arg1[%c8, %c0_35] : memref<9x32xf32, #tpu.memory_space<vmem>>, vector<1x32xf32>
    %c2_36 = arith.constant 2 : index
    %c2_37 = arith.constant 2 : index
    %c0_38 = arith.constant 0 : index
    %50 = vector.load %arg0[%c2_36, %c2_37, %c0_38] : memref<5x5x32xf32, #tpu.memory_space<vmem>>, vector<3x3x32xf32>
    %51 = vector.shape_cast %49 : vector<1x32xf32> to vector<1x1x32xf32>
    %52 = vector.broadcast %51 : vector<1x1x32xf32> to vector<3x3x32xf32>
    %53 = arith.mulf %50, %52 : vector<3x3x32xf32>
    %54 = arith.addf %48, %53 : vector<3x3x32xf32>
    %c0_39 = arith.constant 0 : index
    %c0_40 = arith.constant 0 : index
    %c0_41 = arith.constant 0 : index
    %55 = vector.load %arg3[%c0_39, %c0_40, %c0_41] : memref<3x3x32xf32, #tpu.memory_space<vmem>>, vector<3x3x32xf32>
    tpu.vector_store %arg3[%c0_39, %c0_40, %c0_41], %54 {strides = array<i32>} : memref<3x3x32xf32, #tpu.memory_space<vmem>>, vector<3x3x32xf32>,
    return
  }
}

</mosaic_0001>

<llo_original>
// kernel: tpu_custom_call.1
$region0: #{tpu_custom_call.1}
  #allocation0 [shape = 'u32[]', space=smem, size = 0x4, offset = 0x4, fixed_abs, tag = 'smem constant byte address 0x4 - core index']
  #allocation1 [shape = 'u32[144,128]{1,0:T(1,128)}', space=vmem, size = 0x12000, scoped, tag = 'internal scratch']
  %s0 = inlined_call_operand.hbm [shape: f32[5,5,32], index: 0, kind: input, shape index: {}]
  %s1 = inlined_call_operand.hbm [shape: f32[9,32], index: 1, kind: input, shape index: {}]
  %s2 = inlined_call_operand.hbm [shape: f32[3,3,32], index: 2, kind: input, shape index: {}]
  %s3 = inlined_call_operand.hbm [shape: f32[3,3,32], index: 3, kind: output, shape index: {}]
  %s4 = sld [smem:[#allocation0]]
  $region34: #{tpu_custom_call.1} parent=0
    _
  %s6 = ssub.s32 1, %s4
  %s7 = scalar_select 0, %s6, %s4
  $region1: #{tpu_custom_call.1} parent=0
    #allocation2 [shape = 'u8[20480]{0}', space=vmem, size = 0x5000, scoped, tag = 'input window, operand 0, single buffered']
    #allocation3 [shape = 's32[1]{0}', space=sflag, size = 0x4, scoped, tag = 'scoped memory for tpu_custom_call.1']
    #allocation4 [shape = 's32[1]{0}', space=sflag, size = 0x4, scoped, tag = 'scoped memory for tpu_custom_call.1']
    #allocation5 [shape = 'u8[8192]{0}', space=vmem, size = 0x2000, scoped, tag = 'input window, operand 1, single buffered']
    #allocation6 [shape = 's32[1]{0}', space=sflag, size = 0x4, scoped, tag = 'scoped memory for tpu_custom_call.1']
    #allocation7 [shape = 'u8[6144]{0}', space=vmem, size = 0x1800, scoped, tag = 'input window, operand 2, single buffered']
    #allocation8 [shape = 'u8[6144]{0}', space=vmem, size = 0x1800, scoped, tag = 'output window, operand 0, single buffered']
    %8 = vsyncpa [#allocation3], 0
    %9 = vsyncpa [#allocation6], 0
    %10 = vsyncpa [#allocation4], 0
    // Predicated region
    $region2: #{tpu_custom_call.1} parent=1 // pred_check
      _
    $region3: #{tpu_custom_call.1} parent=1 // pred_check_branch
      %12 = sbr.rel (0) target = $region5
    $region4: #{tpu_custom_call.1} parent=1 // pred_region
      %s14 = ssub.s32 640, 640
      %15 = vsyncadd [#allocation3], %s14
      %s16 = sshll.u32 [#allocation2], 4
      %s17 = int_to_ptr.vmem [resolvable:$true] %s16
      %22 = dma.hbm_to_vmem [thread:$0]  %s0, 640, %s17, [#allocation3], 128, 128, 8
    $region5: #{tpu_custom_call.1} parent=1 // pred_fallthru
      _
    // Predicated region
    $region6: #{tpu_custom_call.1} parent=1 // pred_check
      _
    $region7: #{tpu_custom_call.1} parent=1 // pred_check_branch
      %24 = sbr.rel (0) target = $region9
    $region8: #{tpu_custom_call.1} parent=1 // pred_region
      %s26 = ssub.s32 256, 256
      %27 = vsyncadd [#allocation6], %s26
      %s28 = sshll.u32 [#allocation5], 4
      %s29 = int_to_ptr.vmem [resolvable:$true] %s28
      %34 = dma.hbm_to_vmem [thread:$0]  %s1, 256, %s29, [#allocation6], 128, 128, 8
    $region9: #{tpu_custom_call.1} parent=1 // pred_fallthru
      _
    // Predicated region
    $region10: #{tpu_custom_call.1} parent=1 // pred_check
      _
    $region11: #{tpu_custom_call.1} parent=1 // pred_check_branch
      %36 = sbr.rel (0) target = $region13
    $region12: #{tpu_custom_call.1} parent=1 // pred_region
      %s38 = ssub.s32 192, 192
      %39 = vsyncadd [#allocation6], %s38
      %s40 = sshll.u32 [#allocation7], 4
      %s41 = int_to_ptr.vmem [resolvable:$true] %s40
      %46 = dma.hbm_to_vmem [thread:$0]  %s2, 192, %s41, [#allocation6], 64, 64, 4
    $region13: #{tpu_custom_call.1} parent=1 // pred_fallthru
      _
    // Predicated region
    $region14: #{tpu_custom_call.1} parent=1 // pred_check
      _
    $region15: #{tpu_custom_call.1} parent=1 // pred_check_branch
      %48 = sbr.rel (0) target = $region17
    $region16: #{tpu_custom_call.1} parent=1 // pred_region
      %49 = dma.done [#allocation3], 640
    $region17: #{tpu_custom_call.1} parent=1 // pred_fallthru
      _
    // Predicated region
    $region18: #{tpu_custom_call.1} parent=1 // pred_check
      _
    $region19: #{tpu_custom_call.1} parent=1 // pred_check_branch
      %51 = sbr.rel (0) target = $region21
    $region20: #{tpu_custom_call.1} parent=1 // pred_region
      %52 = dma.done [#allocation6], 256
    $region21: #{tpu_custom_call.1} parent=1 // pred_fallthru
      _
    // Predicated region
    $region22: #{tpu_custom_call.1} parent=1 // pred_check
      _
    $region23: #{tpu_custom_call.1} parent=1 // pred_check_branch
      %54 = sbr.rel (0) target = $region25
    $region24: #{tpu_custom_call.1} parent=1 // pred_region
      %55 = dma.done [#allocation6], 192
    $region25: #{tpu_custom_call.1} parent=1 // pred_fallthru
      _
    %v56 = vld [vmem:[#allocation7] sm:$0x7]
    %v57 = vld [vmem:[#allocation7 + $0x4] sm:$0x7]
    %v58 = vld [vmem:[#allocation7 + $0x8] sm:$0x7]
    %v59 = vld [vmem:[#allocation5] sm:$0x1]
    %v60 = vld [vmem:[#allocation2] sm:$0x7]
    %v61 = vld [vmem:[#allocation2 + $0x8] sm:$0x7]
    %v62 = vld [vmem:[#allocation2 + $0x10] sm:$0x7]
    %v63 = vlaneseq
    %v64 = vshrl.u32 %v63, 7
    %v65 = vsub.s32 0, %v64
    %v66 = vrot.slane %v59, %v65
    %v67 = vmul.f32 %v60, %v66
    %v68 = vmul.f32 %v61, %v66
    %v69 = vmul.f32 %v62, %v66
    %v70 = vadd.f32 %v56, %v67
    %v71 = vadd.f32 %v57, %v68
    %v72 = vadd.f32 %v58, %v69
    %v73 = vld [vmem:[#allocation5 + $0x1] sm:$0x1]
    %v74 = vld [vmem:[#allocation2 + $0x1] sm:$0x7]
    %v75 = vld [vmem:[#allocation2 + $0x9] sm:$0x7]
    %v76 = vld [vmem:[#allocation2 + $0x11] sm:$0x7]
    %v77 = vlaneseq
    %v78 = vshrl.u32 %v77, 7
    %v79 = vsub.s32 0, %v78
    %v80 = vrot.slane %v73, %v79
    %v81 = vmul.f32 %v74, %v80
    %v82 = vmul.f32 %v75, %v80
    %v83 = vmul.f32 %v76, %v80
    %v84 = vadd.f32 %v70, %v81
    %v85 = vadd.f32 %v71, %v82
    %v86 = vadd.f32 %v72, %v83
    %v87 = vld [vmem:[#allocation5 + $0x2] sm:$0x1]
    %v88 = vld [vmem:[#allocation2 + $0x2] sm:$0x7]
    %v89 = vld [vmem:[#allocation2 + $0xa] sm:$0x7]
    %v90 = vld [vmem:[#allocation2 + $0x12] sm:$0x7]
    %v91 = vlaneseq
    %v92 = vshrl.u32 %v91, 7
    %v93 = vsub.s32 0, %v92
    %v94 = vrot.slane %v87, %v93
    %v95 = vmul.f32 %v88, %v94
    %v96 = vmul.f32 %v89, %v94
    %v97 = vmul.f32 %v90, %v94
    %v98 = vadd.f32 %v84, %v95
    %v99 = vadd.f32 %v85, %v96
    %v100 = vadd.f32 %v86, %v97
    %v101 = vld [vmem:[#allocation5 + $0x3] sm:$0x1]
    %s102 = scalar_lea.vmem [#allocation2], 8
    %v103 = vld [vmem:[%s102] sm:$0x7]
    %v104 = vld [vmem:[%s102 + $0x8] sm:$0x7]
    %v105 = vld [vmem:[%s102 + $0x10] sm:$0x7]
    %v106 = vlaneseq
    %v107 = vshrl.u32 %v106, 7
    %v108 = vsub.s32 0, %v107
    %v109 = vrot.slane %v101, %v108
    %v110 = vmul.f32 %v103, %v109
    %v111 = vmul.f32 %v104, %v109
    %v112 = vmul.f32 %v105, %v109
    %v113 = vadd.f32 %v98, %v110
    %v114 = vadd.f32 %v99, %v111
    %v115 = vadd.f32 %v100, %v112
    %v116 = vld [vmem:[#allocation5 + $0x4] sm:$0x1]
    %v117 = vld [vmem:[%s102 + $0x1] sm:$0x7]
    %v118 = vld [vmem:[%s102 + $0x9] sm:$0x7]
    %v119 = vld [vmem:[%s102 + $0x11] sm:$0x7]
    %v120 = vlaneseq
    %v121 = vshrl.u32 %v120, 7
    %v122 = vsub.s32 0, %v121
    %v123 = vrot.slane %v116, %v122
    %v124 = vmul.f32 %v117, %v123
    %v125 = vmul.f32 %v118, %v123
    %v126 = vmul.f32 %v119, %v123
    %v127 = vadd.f32 %v113, %v124
    %v128 = vadd.f32 %v114, %v125
    %v129 = vadd.f32 %v115, %v126
    %v130 = vld [vmem:[#allocation5 + $0x5] sm:$0x1]
    %v131 = vld [vmem:[%s102 + $0x2] sm:$0x7]
    %v132 = vld [vmem:[%s102 + $0xa] sm:$0x7]
    %v133 = vld [vmem:[%s102 + $0x12] sm:$0x7]
    %v134 = vlaneseq
    %v135 = vshrl.u32 %v134, 7
    %v136 = vsub.s32 0, %v135
    %v137 = vrot.slane %v130, %v136
    %v138 = vmul.f32 %v131, %v137
    %v139 = vmul.f32 %v132, %v137
    %v140 = vmul.f32 %v133, %v137
    %v141 = vadd.f32 %v127, %v138
    %v142 = vadd.f32 %v128, %v139
    %v143 = vadd.f32 %v129, %v140
    %v144 = vld [vmem:[#allocation5 + $0x6] sm:$0x1]
    %s145 = scalar_lea.vmem [#allocation2], 16
    %v146 = vld [vmem:[%s145] sm:$0x7]
    %v147 = vld [vmem:[%s145 + $0x8] sm:$0x7]
    %v148 = vld [vmem:[%s145 + $0x10] sm:$0x7]
    %v149 = vlaneseq
    %v150 = vshrl.u32 %v149, 7
    %v151 = vsub.s32 0, %v150
    %v152 = vrot.slane %v144, %v151
    %v153 = vmul.f32 %v146, %v152
    %v154 = vmul.f32 %v147, %v152
    %v155 = vmul.f32 %v148, %v152
    %v156 = vadd.f32 %v141, %v153
    %v157 = vadd.f32 %v142, %v154
    %v158 = vadd.f32 %v143, %v155
    %v159 = vld [vmem:[#allocation5 + $0x7] sm:$0x1]
    %v160 = vld [vmem:[%s145 + $0x1] sm:$0x7]
    %v161 = vld [vmem:[%s145 + $0x9] sm:$0x7]
    %v162 = vld [vmem:[%s145 + $0x11] sm:$0x7]
    %v163 = vlaneseq
    %v164 = vshrl.u32 %v163, 7
    %v165 = vsub.s32 0, %v164
    %v166 = vrot.slane %v159, %v165
    %v167 = vmul.f32 %v160, %v166
    %v168 = vmul.f32 %v161, %v166
    %v169 = vmul.f32 %v162, %v166
    %v170 = vadd.f32 %v156, %v167
    %v171 = vadd.f32 %v157, %v168
    %v172 = vadd.f32 %v158, %v169
    %v173 = vld [vmem:[#allocation5 + $0x8] sm:$0x1]
    %v174 = vld [vmem:[%s145 + $0x2] sm:$0x7]
    %v175 = vld [vmem:[%s145 + $0xa] sm:$0x7]
    %v176 = vld [vmem:[%s145 + $0x12] sm:$0x7]
    %v177 = vlaneseq
    %v178 = vshrl.u32 %v177, 7
    %v179 = vsub.s32 0, %v178
    %v180 = vrot.slane %v173, %v179
    %v181 = vmul.f32 %v174, %v180
    %v182 = vmul.f32 %v175, %v180
    %v183 = vmul.f32 %v176, %v180
    %v184 = vadd.f32 %v170, %v181
    %v185 = vadd.f32 %v171, %v182
    %v186 = vadd.f32 %v172, %v183
    %vm187 = vcmask 256000
    %188 = vst.msk [vmem:[#allocation8] sm:$0x7] %vm187, %v184
    %189 = vst.msk [vmem:[#allocation8 + $0x4] sm:$0x7] %vm187, %v185
    %190 = vst.msk [vmem:[#allocation8 + $0x8] sm:$0x7] %vm187, %v186
    // Predicated region
    $region26: #{tpu_custom_call.1} parent=1 // pred_check
      _
    $region27: #{tpu_custom_call.1} parent=1 // pred_check_branch
      %192 = sbr.rel (0) target = $region29
    $region28: #{tpu_custom_call.1} parent=1 // pred_region
      %s194 = ssub.s32 192, 192
      %195 = vsyncadd [#allocation4], %s194
      %s196 = sshll.u32 [#allocation8], 4
      %s197 = int_to_ptr.vmem [resolvable:$true] %s196
      %202 = dma.vmem_to_hbm [thread:$0]  %s197, 192, %s3, [#allocation4], 64, 64, 4
    $region29: #{tpu_custom_call.1} parent=1 // pred_fallthru
      _
    // Predicated region
    $region30: #{tpu_custom_call.1} parent=1 // pred_check
      _
    $region31: #{tpu_custom_call.1} parent=1 // pred_check_branch
      %204 = sbr.rel (0) target = $region33
    $region32: #{tpu_custom_call.1} parent=1 // pred_region
      %205 = dma.done [#allocation4], 192
    $region33: #{tpu_custom_call.1} parent=1 // pred_fallthru
      _
    %206 = vsyncpa [#allocation3], 1
    %207 = vsyncpa [#allocation6], 1
    %208 = vsyncpa [#allocation4], 1

</llo_original>
